<compile_context>
chip_gen: v5e
topology: v5e:2x2
jax: 0.10.0
libtpu: 0.0.40
codegen_flags: <defaults>
</compile_context>

<pallas_src>
import functools

import jax
import jax.numpy as jnp
from jax.experimental import pallas as pl
from jax.experimental.pallas import tpu as pltpu


def _round_up(x, m):
    return ((x + m - 1) // m) * m


# -----------------------------------------------------------------------------
# Kernels
# -----------------------------------------------------------------------------

def _sdot_lse_kernel(x_ref, yT_ref, pre_ref, xsq_ref, o_ref, m_ref, l_ref, *, reg):
    """reg > 0 branch.

    z   = x @ yT_s + pre      with  yT_s = (2/reg) * target.T,
                                    pre  = (psi - |y|^2) / reg
    out = |x|^2 - reg * logsumexp_j(z)      (mean(psi) added by the wrapper)

    Online (streaming) logsumexp over the j (target-tile) grid axis with
    per-row running max (m_ref) and running sum (l_ref) scratch accumulators.
    """
    j = pl.program_id(1)

    @pl.when(j == 0)
    def _():
        m_ref[...] = jnp.full_like(m_ref, -jnp.inf)
        l_ref[...] = jnp.zeros_like(l_ref)

    # One MXU matmul per step; operands stream in their storage dtype
    # (f32 or bf16), accumulation is always f32.
    z = jnp.dot(x_ref[...], yT_ref[...], preferred_element_type=jnp.float32)
    z = z + pre_ref[...]                              # hoisted per-target term

    m_prev = m_ref[...]
    m_new = jnp.maximum(m_prev, jnp.max(z, axis=1, keepdims=True))
    l_ref[...] = (jnp.exp(m_prev - m_new) * l_ref[...]
                  + jnp.sum(jnp.exp(z - m_new), axis=1, keepdims=True))
    m_ref[...] = m_new

    @pl.when(j == pl.num_programs(1) - 1)
    def _():
        o_ref[...] = (xsq_ref[...]
                      - reg * (m_ref[...] + jnp.log(l_ref[...]))
                      ).astype(o_ref.dtype)


def _sdot_min_kernel(x_ref, yT_ref, pre_ref, xsq_ref, o_ref, min_ref):
    """reg == 0 branch: out = |x|^2 + min_j(x @ yT_s + pre),
    with yT_s = -2 * target.T and pre = |y|^2 - psi."""
    j = pl.program_id(1)

    @pl.when(j == 0)
    def _():
        min_ref[...] = jnp.full_like(min_ref, jnp.inf)

    val = jnp.dot(x_ref[...], yT_ref[...], preferred_element_type=jnp.float32)
    val = val + pre_ref[...]
    min_ref[...] = jnp.minimum(min_ref[...],
                               jnp.min(val, axis=1, keepdims=True))

    @pl.when(j == pl.num_programs(1) - 1)
    def _():
        o_ref[...] = (min_ref[...] + xsq_ref[...]).astype(o_ref.dtype)


# -----------------------------------------------------------------------------
# Tile / VMEM selection (generation aware)
# -----------------------------------------------------------------------------

def _vmem_capacity_bytes():
    try:
        cap = getattr(pltpu.get_tpu_info(), "vmem_capacity_bytes", None)
        if cap:
            return int(cap)
    except Exception:
        pass
    return 64 << 20          # conservative fallback (v7x physical VMEM)


def _choose_tiles(M, N, D, x_bytes, y_bytes):
    """Pick (tm, tn, vmem_limit).

    Budget accounts for the double-buffered input blocks AND ~4x (tm, tn) f32
    matmul / exp intermediates.  Budget is ~72 MiB on v5e/v6e (128 MiB VMEM)
    and ~36 MiB on v7x (64 MiB physical) to keep spill / Mosaic-scratch
    headroom.
    """
    cap = _vmem_capacity_bytes()
    budget = (72 << 20) if cap >= (100 << 20) else (36 << 20)

    # --- row tile -------------------------------------------------------------
    # Bigger tm => target.T re-stream traffic ~ 1/tm and fewer grid steps;
    # clamp by D (and the budget) so the (tm, D) x tile can never blow VMEM.
    if D <= 512:
        tm_cap = 512
    elif D <= 4096:
        tm_cap = 256
    else:
        tm_cap = 64
    tm = min(tm_cap, _round_up(M, 8))
    while tm > 8 and 2 * tm * D * x_bytes > budget // 4:
        tm = max(8, _round_up(tm // 2, 8))

    # Megacore (v7x has 2 TensorCores): give the "parallel" row axis >= 2
    # tiles when M is big enough for the split to be worth the extra
    # target.T re-stream.
    if M > 128 and _round_up(M, tm) // tm < 2:
        tm = _round_up((M + 1) // 2, 8)

    # --- target tile ------------------------------------------------------------
    #   2 * (x + yT + pre + xsq) double buffers + ~4 * (tm, tn) f32 temporaries
    fixed = 2 * (tm * D * x_bytes + tm * 4) + 3 * tm * 4       # x, xsq, out, scratch
    per_tn = 2 * (D * y_bytes + 4) + 4 * tm * 4
    max_tn = max(0, budget - fixed) // max(per_tn, 1)
    max_tn = max(128, (max_tn // 128) * 128)

    tn_full = _round_up(N, 128)
    if tn_full <= max_tn:
        tn = tn_full          # whole target set resident in VMEM across row tiles
    else:
        tn = min(max_tn, 4096)  # cap per-step (tm, tn) temporaries
    tn = max(tn, 128)

    est = fixed + per_tn * tn
    vmem_limit = int(min(cap - (16 << 20), est + (8 << 20)))
    vmem_limit = max(vmem_limit, 32 << 20)
    return tm, tn, vmem_limit


# -----------------------------------------------------------------------------
# Wrapper
# -----------------------------------------------------------------------------

def sdot_forward(source_data, transpose_data, psi, reg_param, *,
                 tm=None, tn=None, matmul_dtype=None):
    """Pallas implementation of SDOT.forward.

    source_data:    (M, D)
    transpose_data: (D, N)   (= target_data.T, as stored by the module)
    psi:            (N,)
    reg_param:      python float (module buffer, fixed at init)
    matmul_dtype:   jnp.float32 (default; matches the PyTorch f32 numerics) or
                    jnp.bfloat16 (fast path: single-pass MXU + half the HBM /
                    VMEM for the streamed operands; accuracy ~1e-1 absolute at
                    these data scales -- validate per use case).
    returns:        (M,) float32
    """
    M, D = source_data.shape
    D2, N = transpose_data.shape
    assert D == D2 and psi.shape == (N,)
    reg = float(reg_param)

    if matmul_dtype is None:
        matmul_dtype = (jnp.bfloat16
                        if (source_data.dtype == jnp.bfloat16
                            and transpose_data.dtype == jnp.bfloat16)
                        else jnp.float32)

    x_f32 = source_data.astype(jnp.float32)
    yT_f32 = transpose_data.astype(jnp.float32)
    psi_f = psi.astype(jnp.float32)

    # ---- hoisted O(M*D) / O(D*N) precomputation (once, outside the kernel) ---
    x_sq = jnp.sum(x_f32 * x_f32, axis=1, keepdims=True)            # (M, 1) f32
    y_sq = jnp.sum(yT_f32 * yT_f32, axis=0, keepdims=True)          # (1, N) f32
    if reg > 0:
        scale = 2.0 / reg
        pre = (psi_f[None, :] - y_sq) * (1.0 / reg)                 # (1, N) f32
        pad_val = -jnp.inf      # exp(-inf)=0 -> padded target columns ignored
        kernel = functools.partial(_sdot_lse_kernel, reg=reg)
        n_scratch = 2                                               # running max, sum
    else:
        scale = -2.0
        pre = y_sq - psi_f[None, :]
        pad_val = jnp.inf       # min() ignores padded target columns
        kernel = _sdot_min_kernel
        n_scratch = 1                                               # running min

    # Fold the constant scale into the target operand (streamed once per row
    # tile) so the inner step has no per-element scaling at all.
    x_op = x_f32.astype(matmul_dtype)
    yT_op = (yT_f32 * scale).astype(matmul_dtype)

    op_bytes = jnp.dtype(matmul_dtype).itemsize
    auto_tm, auto_tn, vmem_limit = _choose_tiles(M, N, D, op_bytes, op_bytes)
    tm = auto_tm if tm is None else tm
    tn = auto_tn if tn is None else tn

    M_pad = _round_up(M, tm)
    N_pad = _round_up(N, tn)
    # The last target tile must contain >= 1 real column: an all-padded tile
    # would leave the running max at -inf and produce NaNs in the online LSE.
    assert N_pad - N < tn, "tile selection produced an all-padding target tile"

    if M_pad != M:
        x_op = jnp.pad(x_op, ((0, M_pad - M), (0, 0)))              # zero rows
        x_sq = jnp.pad(x_sq, ((0, M_pad - M), (0, 0)))
    if N_pad != N:
        yT_op = jnp.pad(yT_op, ((0, 0), (0, N_pad - N)))            # zero cols
        pre = jnp.pad(pre, ((0, 0), (0, N_pad - N)), constant_values=pad_val)

    grid = (M_pad // tm, N_pad // tn)

    grid_spec = pltpu.PrefetchScalarGridSpec(
        num_scalar_prefetch=0,
        grid=grid,
        in_specs=[
            pl.BlockSpec((tm, D), lambda i, j: (i, 0)),   # x rows (const over j)
            pl.BlockSpec((D, tn), lambda i, j: (0, j)),   # scaled target.T cols
            pl.BlockSpec((1, tn), lambda i, j: (0, j)),   # hoisted per-target term
            pl.BlockSpec((tm, 1), lambda i, j: (i, 0)),   # |x|^2 (f32)
        ],
        out_specs=pl.BlockSpec((tm, 1), lambda i, j: (i, 0)),
        scratch_shapes=[pltpu.VMEM((tm, 1), jnp.float32)] * n_scratch,
    )

    out = pl.pallas_call(
        kernel,
        out_shape=jax.ShapeDtypeStruct((M_pad, 1), jnp.float32),
        grid_spec=grid_spec,
        compiler_params=pltpu.CompilerParams(
            dimension_semantics=("parallel", "arbitrary"),
            vmem_limit_bytes=vmem_limit),
    )(x_op, yT_op, pre, x_sq)

    # Glue: slice off padded rows + scalar mean(psi) shift.
    return out[:M, 0] + jnp.mean(psi_f)


def sdot_reference(source_data, transpose_data, psi, reg_param):
    """Pure-JAX reference mirroring the PyTorch forward (f32)."""
    cost_xy = (jnp.sum(source_data ** 2, axis=1, keepdims=True)
               + jnp.sum(transpose_data ** 2, axis=0, keepdims=True)
               - 2.0 * source_data @ transpose_data)
    if reg_param > 0:
        return (-reg_param
                * jax.scipy.special.logsumexp((psi[None, :] - cost_xy) / reg_param,
                                              axis=1)
                + jnp.mean(psi))
    return jnp.min(cost_xy - psi[None, :], axis=1) + jnp.mean(psi)


if __name__ == "__main__":
    key = jax.random.PRNGKey(0)
    k1, k2, k3 = jax.random.split(key, 3)

    # Case 1: entropic branch, tile-aligned shapes (matches module defaults).
    M, D, N = 16, 32, 256
    reg_param = 0.05
    src = jax.random.normal(k1, (M, D), dtype=jnp.float32)
    tgt = jax.random.normal(k2, (N, D), dtype=jnp.float32)
    psi = jnp.zeros((N,), dtype=jnp.float32)        # matches nn.Parameter(zeros)

    out = jax.block_until_ready(sdot_forward(src, tgt.T, psi, reg_param))
    ref = sdot_reference(src, tgt.T, psi, reg_param)
    assert out.shape == (M,)
    assert jnp.allclose(out, ref, rtol=1e-4, atol=1e-4), (out, ref)

    # Case 2: non-divisible M / N with non-trivial psi (exercises padding).
    M2, D2, N2 = 20, 32, 200
    src2 = jax.random.normal(k3, (M2, D2), dtype=jnp.float32)
    tgt2 = jax.random.normal(k2, (N2, D2), dtype=jnp.float32)
    psi2 = 0.1 * jax.random.normal(k1, (N2,), dtype=jnp.float32)
    out2 = jax.block_until_ready(sdot_forward(src2, tgt2.T, psi2, reg_param))
    ref2 = sdot_reference(src2, tgt2.T, psi2, reg_param)
    assert jnp.allclose(out2, ref2, rtol=1e-4, atol=1e-4), (out2, ref2)

    # Case 3: reg == 0 (hard-min branch).
    out3 = jax.block_until_ready(sdot_forward(src2, tgt2.T, psi2, 0.0))
    ref3 = sdot_reference(src2, tgt2.T, psi2, 0.0)
    assert jnp.allclose(out3, ref3, rtol=1e-4, atol=1e-4), (out3, ref3)

    # Case 4: bf16 fast path (single-pass MXU, bf16 streaming).  Looser
    # tolerance: bf16 operand rounding of x.y enters the LSE exponent scaled
    # by 2/reg, giving ~1e-1 absolute error at these data scales.
    out4 = jax.block_until_ready(
        sdot_forward(src2, tgt2.T, psi2, reg_param, matmul_dtype=jnp.bfloat16))
    assert jnp.allclose(out4, ref2, rtol=2e-2, atol=2e-1), (out4, ref2)

    print("KERNEL_OK")
</pallas_src>

<mosaic_0001>
module attributes {stable_mosaic.version = 11 : i64} {
  func.func @_sdot_lse_kernel(%arg0: i32, %arg1: i32, %arg2: memref<16x32xf32, #tpu.memory_space<vmem>>, %arg3: memref<32x256xf32, #tpu.memory_space<vmem>>, %arg4: memref<1x256xf32, #tpu.memory_space<vmem>>, %arg5: memref<16x1xf32, #tpu.memory_space<vmem>>, %arg6: memref<16x1xf32, #tpu.memory_space<vmem>>, %arg7: memref<16x1xf32, #tpu.memory_space<vmem>>, %arg8: memref<16x1xf32, #tpu.memory_space<vmem>>) attributes {dimension_semantics = [#tpu.dimension_semantics<parallel>, #tpu.dimension_semantics<arbitrary>], iteration_bounds = array<i64: 1, 1>, scalar_prefetch = 0 : i64, scratch_operands = 2 : i64, tpu.core_type = #tpu.core_type<tc>, window_params = [{transform_indices = @transform_0, window_bounds = array<i64: 16, 32>}, {transform_indices = @transform_1, window_bounds = array<i64: 32, 256>}, {transform_indices = @transform_2, window_bounds = array<i64: 1, 256>}, {transform_indices = @transform_3, window_bounds = array<i64: 16, 1>}, {transform_indices = @transform_4, window_bounds = array<i64: 16, 1>}]} {
    %c0_i32 = arith.constant 0 : i32
    %0 = arith.cmpi eq, %arg1, %c0_i32 : i32
    %1 = arith.extui %0 : i1 to i32
    %c0_i32_0 = arith.constant 0 : i32
    %2 = arith.cmpi ne, %1, %c0_i32_0 : i32
    scf.if %2 {
      %cst_18 = arith.constant 0xFF800000 : f32
      %28 = vector.broadcast %cst_18 : f32 to vector<16x1xf32>
      %c0_19 = arith.constant 0 : index
      %c0_20 = arith.constant 0 : index
      %29 = vector.load %arg7[%c0_19, %c0_20] : memref<16x1xf32, #tpu.memory_space<vmem>>, vector<16x1xf32>
      tpu.vector_store %arg7[%c0_19, %c0_20], %28 {strides = array<i32>} : memref<16x1xf32, #tpu.memory_space<vmem>>, vector<16x1xf32>,
      %cst_21 = arith.constant 0.000000e+00 : f32
      %30 = vector.broadcast %cst_21 : f32 to vector<16x1xf32>
      %c0_22 = arith.constant 0 : index
      %c0_23 = arith.constant 0 : index
      %31 = vector.load %arg8[%c0_22, %c0_23] : memref<16x1xf32, #tpu.memory_space<vmem>>, vector<16x1xf32>
      tpu.vector_store %arg8[%c0_22, %c0_23], %30 {strides = array<i32>} : memref<16x1xf32, #tpu.memory_space<vmem>>, vector<16x1xf32>,
    } else {
    }
    %c0 = arith.constant 0 : index
    %c0_1 = arith.constant 0 : index
    %3 = vector.load %arg2[%c0, %c0_1] : memref<16x32xf32, #tpu.memory_space<vmem>>, vector<16x32xf32>
    %c0_2 = arith.constant 0 : index
    %c0_3 = arith.constant 0 : index
    %4 = vector.load %arg3[%c0_2, %c0_3] : memref<32x256xf32, #tpu.memory_space<vmem>>, vector<32x256xf32>
    %cst = arith.constant dense<0.000000e+00> : vector<16x256xf32>
    %5 = tpu.matmul %3, %4, %cst {dimension_numbers = #tpu.dot_dimension_numbers<[1], [0], [0], [1], [0, 0, 1, 1], [], []>} : vector<16x32xf32>, vector<32x256xf32>, vector<16x256xf32> -> vector<16x256xf32>
    %c0_4 = arith.constant 0 : index
    %c0_5 = arith.constant 0 : index
    %6 = vector.load %arg4[%c0_4, %c0_5] : memref<1x256xf32, #tpu.memory_space<vmem>>, vector<1x256xf32>
    %7 = vector.broadcast %6 : vector<1x256xf32> to vector<16x256xf32>
    %8 = arith.addf %5, %7 : vector<16x256xf32>
    %c0_6 = arith.constant 0 : index
    %c0_7 = arith.constant 0 : index
    %9 = vector.load %arg7[%c0_6, %c0_7] : memref<16x1xf32, #tpu.memory_space<vmem>>, vector<16x1xf32>
    %cst_8 = arith.constant dense<0xFF800000> : vector<16xf32>
    %10 = vector.multi_reduction <maximumf>, %8, %cst_8 [1] : vector<16x256xf32> to vector<16xf32>
    %11 = vector.shape_cast %10 : vector<16xf32> to vector<16x1xf32>
    %12 = arith.maximumf %9, %11 : vector<16x1xf32>
    %13 = arith.subf %9, %12 : vector<16x1xf32>
    %14 = math.exp %13 : vector<16x1xf32>
    %c0_9 = arith.constant 0 : index
    %c0_10 = arith.constant 0 : index
    %15 = vector.load %arg8[%c0_9, %c0_10] : memref<16x1xf32, #tpu.memory_space<vmem>>, vector<16x1xf32>
    %16 = arith.mulf %14, %15 : vector<16x1xf32>
    %17 = vector.broadcast %12 : vector<16x1xf32> to vector<16x256xf32>
    %18 = arith.subf %8, %17 : vector<16x256xf32>
    %19 = math.exp %18 : vector<16x256xf32>
    %cst_11 = arith.constant dense<0.000000e+00> : vector<16xf32>
    %20 = vector.multi_reduction <add>, %19, %cst_11 [1] : vector<16x256xf32> to vector<16xf32>
    %21 = vector.shape_cast %20 : vector<16xf32> to vector<16x1xf32>
    %22 = arith.addf %16, %21 : vector<16x1xf32>
    %c0_12 = arith.constant 0 : index
    %c0_13 = arith.constant 0 : index
    %23 = vector.load %arg8[%c0_12, %c0_13] : memref<16x1xf32, #tpu.memory_space<vmem>>, vector<16x1xf32>
    tpu.vector_store %arg8[%c0_12, %c0_13], %22 {strides = array<i32>} : memref<16x1xf32, #tpu.memory_space<vmem>>, vector<16x1xf32>,
    %c0_14 = arith.constant 0 : index
    %c0_15 = arith.constant 0 : index
    %24 = vector.load %arg7[%c0_14, %c0_15] : memref<16x1xf32, #tpu.memory_space<vmem>>, vector<16x1xf32>
    tpu.vector_store %arg7[%c0_14, %c0_15], %12 {strides = array<i32>} : memref<16x1xf32, #tpu.memory_space<vmem>>, vector<16x1xf32>,
    %c0_i32_16 = arith.constant 0 : i32
    %25 = arith.cmpi eq, %arg1, %c0_i32_16 : i32
    %26 = arith.extui %25 : i1 to i32
    %c0_i32_17 = arith.constant 0 : i32
    %27 = arith.cmpi ne, %26, %c0_i32_17 : i32
    scf.if %27 {
      %c0_18 = arith.constant 0 : index
      %c0_19 = arith.constant 0 : index
      %28 = vector.load %arg5[%c0_18, %c0_19] : memref<16x1xf32, #tpu.memory_space<vmem>>, vector<16x1xf32>
      %c0_20 = arith.constant 0 : index
      %c0_21 = arith.constant 0 : index
      %29 = vector.load %arg7[%c0_20, %c0_21] : memref<16x1xf32, #tpu.memory_space<vmem>>, vector<16x1xf32>
      %c0_22 = arith.constant 0 : index
      %c0_23 = arith.constant 0 : index
      %30 = vector.load %arg8[%c0_22, %c0_23] : memref<16x1xf32, #tpu.memory_space<vmem>>, vector<16x1xf32>
      %31 = math.log %30 : vector<16x1xf32>
      %32 = arith.addf %29, %31 : vector<16x1xf32>
      %cst_24 = arith.constant 5.000000e-02 : f32
      %33 = vector.broadcast %cst_24 : f32 to vector<16x1xf32>
      %34 = arith.mulf %33, %32 : vector<16x1xf32>
      %35 = arith.subf %28, %34 : vector<16x1xf32>
      %c0_25 = arith.constant 0 : index
      %c0_26 = arith.constant 0 : index
      %36 = vector.load %arg6[%c0_25, %c0_26] : memref<16x1xf32, #tpu.memory_space<vmem>>, vector<16x1xf32>
      tpu.vector_store %arg6[%c0_25, %c0_26], %35 {strides = array<i32>} : memref<16x1xf32, #tpu.memory_space<vmem>>, vector<16x1xf32>,
    } else {
    }
    return
  }
  func.func @transform_0(%arg0: i32, %arg1: i32) -> (i32, i32) {
    %c0_i32 = arith.constant 0 : i32
    %c0_i32_0 = arith.constant 0 : i32
    return %arg0, %c0_i32 : i32, i32
  }
  func.func @transform_1(%arg0: i32, %arg1: i32) -> (i32, i32) {
    %c0_i32 = arith.constant 0 : i32
    %c0_i32_0 = arith.constant 0 : i32
    return %c0_i32, %arg1 : i32, i32
  }
  func.func @transform_2(%arg0: i32, %arg1: i32) -> (i32, i32) {
    %c0_i32 = arith.constant 0 : i32
    %c0_i32_0 = arith.constant 0 : i32
    return %c0_i32, %arg1 : i32, i32
  }
  func.func @transform_3(%arg0: i32, %arg1: i32) -> (i32, i32) {
    %c0_i32 = arith.constant 0 : i32
    %c0_i32_0 = arith.constant 0 : i32
    return %arg0, %c0_i32 : i32, i32
  }
  func.func @transform_4(%arg0: i32, %arg1: i32) -> (i32, i32) {
    %c0_i32 = arith.constant 0 : i32
    %c0_i32_0 = arith.constant 0 : i32
    return %arg0, %c0_i32 : i32, i32
  }
}

</mosaic_0001>

<llo_original>
// kernel: tpu_custom_call.1
$region0: #{tpu_custom_call.1}
  #allocation0 [shape = 'u32[]', space=smem, size = 0x4, offset = 0x4, fixed_abs, tag = 'smem constant byte address 0x4 - core index']
  #allocation1 [shape = 'u32[72,128]{1,0:T(1,128)}', space=vmem, size = 0x9000, scoped, tag = 'internal scratch']
  #allocation2 [shape = 'f32[16,1]{1,0:T(8,128)}', space=vmem, size = 0x2000, scoped, tag = 'scratch operand']
  #allocation3 [shape = 'f32[16,1]{1,0:T(8,128)}', space=vmem, size = 0x2000, scoped, tag = 'scratch operand']
  %s0 = inlined_call_operand.vmem [shape: f32[16,32], index: 0, kind: input, shape index: {}]
  %s1 = inlined_call_operand.hbm [shape: f32[32,256], index: 1, kind: input, shape index: {}]
  %s2 = inlined_call_operand.hbm [shape: f32[1,256], index: 2, kind: input, shape index: {}]
  %s3 = inlined_call_operand.vmem [shape: f32[16,1], index: 3, kind: input, shape index: {}]
  %s4 = inlined_call_operand.vmem [shape: f32[16,1], index: 4, kind: output, shape index: {}]
  %s5 = sld [smem:[#allocation0]]
  $region42: #{tpu_custom_call.1} parent=0
    _
  %s7 = ssub.s32 1, %s5
  %s8 = scalar_select 0, %s7, %s5
  $region1: #{tpu_custom_call.1} parent=0
    #allocation4 [shape = 'u8[32768]{0}', space=vmem, size = 0x8000, scoped, tag = 'input window, operand 1, single buffered']
    #allocation5 [shape = 's32[1]{0}', space=sflag, size = 0x4, scoped, tag = 'scoped memory for tpu_custom_call.1']
    #allocation6 [shape = 'u8[1024]{0}', space=vmem, size = 0x400, scoped, tag = 'input window, operand 2, single buffered']
    #allocation7 [shape = 's32[1]{0}', space=sflag, size = 0x4, scoped, tag = 'scoped memory for tpu_custom_call.1']
    %9 = vsyncpa [#allocation5], 0
    %10 = vsyncpa [#allocation7], 0
    // Predicated region
    $region2: #{tpu_custom_call.1} parent=1 // pred_check
      _
    $region3: #{tpu_custom_call.1} parent=1 // pred_check_branch
      %12 = sbr.rel (0) target = $region5
    $region4: #{tpu_custom_call.1} parent=1 // pred_region
      _
    $region5: #{tpu_custom_call.1} parent=1 // pred_fallthru
      _
    // Predicated region
    $region6: #{tpu_custom_call.1} parent=1 // pred_check
      _
    $region7: #{tpu_custom_call.1} parent=1 // pred_check_branch
      %14 = sbr.rel (0) target = $region9
    $region8: #{tpu_custom_call.1} parent=1 // pred_region
      %16 = vsyncadd [#allocation5], 0
      %s17 = sshll.u32 %s1, 4
      %s18 = int_to_ptr.hbm [resolvable:$true] %s17
      %s19 = sshll.u32 [#allocation4], 4
      %s20 = int_to_ptr.vmem [resolvable:$true] %s19
      %25 = dma.hbm_to_vmem [thread:$0]  %s18, 1024, %s20, [#allocation5], 256, 256, 16
    $region9: #{tpu_custom_call.1} parent=1 // pred_fallthru
      _
    // Predicated region
    $region10: #{tpu_custom_call.1} parent=1 // pred_check
      _
    $region11: #{tpu_custom_call.1} parent=1 // pred_check_branch
      %27 = sbr.rel (0) target = $region13
    $region12: #{tpu_custom_call.1} parent=1 // pred_region
      %29 = vsyncadd [#allocation7], 0
      %s31 = sshll.u32 %s2, 4
      %s32 = int_to_ptr.hbm [resolvable:$true] %s31
      %s33 = sshll.u32 [#allocation6], 4
      %s34 = int_to_ptr.vmem [resolvable:$true] %s33
      %36 = dma.hbm_to_vmem [thread:$0]  %s32, 32, %s34, [#allocation7]
    $region13: #{tpu_custom_call.1} parent=1 // pred_fallthru
      _
    // Predicated region
    $region14: #{tpu_custom_call.1} parent=1 // pred_check
      _
    $region15: #{tpu_custom_call.1} parent=1 // pred_check_branch
      %38 = sbr.rel (0) target = $region17
    $region16: #{tpu_custom_call.1} parent=1 // pred_region
      _
    $region17: #{tpu_custom_call.1} parent=1 // pred_fallthru
      _
    // Predicated region
    $region18: #{tpu_custom_call.1} parent=1 // pred_check
      _
    $region19: #{tpu_custom_call.1} parent=1 // pred_check_branch
      %40 = sbr.rel (0) target = $region21
    $region20: #{tpu_custom_call.1} parent=1 // pred_region
      %42 = dma.done [#allocation5], 1024
    $region21: #{tpu_custom_call.1} parent=1 // pred_fallthru
      _
    // Predicated region
    $region22: #{tpu_custom_call.1} parent=1 // pred_check
      _
    $region23: #{tpu_custom_call.1} parent=1 // pred_check_branch
      %44 = sbr.rel (0) target = $region25
    $region24: #{tpu_custom_call.1} parent=1 // pred_region
      %46 = dma.done [#allocation7], 32
    $region25: #{tpu_custom_call.1} parent=1 // pred_fallthru
      _
    %p47 = scmp.eq.s32.totalorder 0, 0
    // Predicated region
    $region26: #{tpu_custom_call.1} parent=1 // pred_check
      %p48 = pneg %p47
    $region27: #{tpu_custom_call.1} parent=1 // pred_check_branch
      %50 = sbr.rel (%p48) target = $region29
    $region28: #{tpu_custom_call.1} parent=1 // pred_region
      %vm51 = vcmask 7168
      %52 = vst.msk [vmem:[#allocation2] sm:$0xff] %vm51, -inf
      %53 = vst.msk [vmem:[#allocation2 + $0x8] sm:$0xff] %vm51, -inf
      %54 = vst.msk [vmem:[#allocation3] sm:$0xff] %vm51, 0.0
      %55 = vst.msk [vmem:[#allocation3 + $0x8] sm:$0xff] %vm51, 0.0
    $region29: #{tpu_custom_call.1} parent=1 // pred_fallthru
      _
    %v56 = vld [vmem:[%s0] sm:$0xff]
    %v57 = vld [vmem:[%s0 + $0x8] sm:$0xff]
    %v58 = vld [vmem:[#allocation4] sm:$0xff]
    %v59 = vld [vmem:[#allocation4 + $0x8] sm:$0xff]
    %v60 = vld [vmem:[#allocation4 + $0x10] sm:$0xff]
    %v61 = vld [vmem:[#allocation4 + $0x18] sm:$0xff]
    %v62 = vld [vmem:[#allocation4 + $0x20] sm:$0xff]
    %v63 = vld [vmem:[#allocation4 + $0x28] sm:$0xff]
    %v64 = vld [vmem:[#allocation4 + $0x30] sm:$0xff]
    %v65 = vld [vmem:[#allocation4 + $0x38] sm:$0xff]
    %v66 = vld [vmem:[#allocation6] sm:$0x3]
    %v68 = vperm.slane %v66, 0
    %v69 = vperm.slane %v66, 1
    %vm72 = vcmask 261120
    %v74 = vsel %vm72, %v56, 0
    %v77 = vsel %vm72, %v57, 0
    %79 = vmatpush.msra.mxu0 0.0
    %80 = vmatpush.msra.mxu0 0.0
    %81 = vmatpush.msra.mxu0 0.0
    %82 = vmatpush.msra.mxu0 0.0
    %83 = vmatpush.msra.mxu0 0.0
    %84 = vmatpush.msra.mxu0 0.0
    %85 = vmatpush.msra.mxu0 0.0
    %86 = vmatpush.msra.mxu0 0.0
    %87 = vmatpush.msra.mxu0 0.0
    %88 = vmatpush.msra.mxu0 0.0
    %89 = vmatpush.msra.mxu0 0.0
    %90 = vmatpush.msra.mxu0 0.0
    %91 = vmatpush.msra.mxu0 %v64
    %92 = vmatpush.msra.mxu0 %v62
    %93 = vmatpush.msra.mxu0 %v60
    %94 = vmatpush.msra.mxu0 %v58
    %95 = vmatmul.f32.gmra.mxu0 %v74
    %v96 = vpop.f32.mrf.mxu0
    %v97 = vadd.f32 %v68, %v96
    %98 = vmatmul.f32.gmra.mxu0 %v77
    %v99 = vpop.f32.mrf.mxu0
    %v100 = vadd.f32 %v68, %v99
    %101 = vdwg.mxu0
    %102 = vmatpush.msra.mxu0 0.0
    %103 = vmatpush.msra.mxu0 0.0
    %104 = vmatpush.msra.mxu0 0.0
    %105 = vmatpush.msra.mxu0 0.0
    %106 = vmatpush.msra.mxu0 0.0
    %107 = vmatpush.msra.mxu0 0.0
    %108 = vmatpush.msra.mxu0 0.0
    %109 = vmatpush.msra.mxu0 0.0
    %110 = vmatpush.msra.mxu0 0.0
    %111 = vmatpush.msra.mxu0 0.0
    %112 = vmatpush.msra.mxu0 0.0
    %113 = vmatpush.msra.mxu0 0.0
    %114 = vmatpush.msra.mxu0 %v65
    %115 = vmatpush.msra.mxu0 %v63
    %116 = vmatpush.msra.mxu0 %v61
    %117 = vmatpush.msra.mxu0 %v59
    %118 = vmatmul.f32.gmra.mxu0 %v74
    %v119 = vpop.f32.mrf.mxu0
    %v120 = vadd.f32 %v69, %v119
    %121 = vmatmul.f32.gmra.mxu0 %v77
    %v122 = vpop.f32.mrf.mxu0
    %v123 = vadd.f32 %v69, %v122
    %124 = vdwg.mxu0
    %v125 = vld [vmem:[#allocation2] sm:$0xff]
    %v126 = vld [vmem:[#allocation2 + $0x8] sm:$0xff]
    %v127 = vmax.f32 %v97, %v120
    %128 = vmax.xlane.f32.xlu0 %v127
    %v129 = vpop.xlane.xlu0 %128
    %v130 = vmax.f32 %v100, %v123
    %131 = vmax.xlane.f32.xlu0 %v130
    %v132 = vpop.xlane.xlu0 %131
    %v133 = vmax.f32 %v125, %v129
    %v134 = vmax.f32 %v126, %v132
    %v135 = vsub.f32 %v125, %v133
    %v136 = vsub.f32 %v126, %v134
    %v137 = vmul.f32 %v135, 1.442695
    %v138 = vpow.pop %v137
    %v139 = vmul.f32 %v136, 1.442695
    %v140 = vpow.pop %v139
    %v141 = vld [vmem:[#allocation3] sm:$0xff]
    %v142 = vld [vmem:[#allocation3 + $0x8] sm:$0xff]
    %v143 = vmul.f32 %v138, %v141
    %v144 = vmul.f32 %v140, %v142
    %146 = vset.pattern.permute.xlu0 0
    %147 = vperm.xlu0 %146, %v133
    %v148 = vpop.permute.xlu0 %147
    %151 = vset.pattern.permute.xlu0 0
    %152 = vperm.xlu0 %151, %v134
    %v153 = vpop.permute.xlu0 %152
    %v155 = vsub.f32 %v97, %v148
    %v156 = vsub.f32 %v120, %v148
    %v157 = vsub.f32 %v100, %v153
    %v158 = vsub.f32 %v123, %v153
    %v159 = vmul.f32 %v155, 1.442695
    %v160 = vpow.pop %v159
    %v161 = vmul.f32 %v156, 1.442695
    %v162 = vpow.pop %v161
    %v163 = vmul.f32 %v157, 1.442695
    %v164 = vpow.pop %v163
    %v165 = vmul.f32 %v158, 1.442695
    %v166 = vpow.pop %v165
    %v167 = vadd.f32 %v160, %v162
    %168 = vadd.xlane.f32.xlu0 %v167
    %v169 = vpop.xlane.xlu0 %168
    %v170 = vadd.f32 %v164, %v166
    %171 = vadd.xlane.f32.xlu0 %v170
    %v172 = vpop.xlane.xlu0 %171
    %v173 = vadd.f32 %v143, %v169
    %v174 = vadd.f32 %v144, %v172
    %vm175 = vcmask 7168
    %176 = vst.msk [vmem:[#allocation3] sm:$0xff] %vm175, %v173
    %177 = vst.msk [vmem:[#allocation3 + $0x8] sm:$0xff] %vm175, %v174
    %178 = vst.msk [vmem:[#allocation2] sm:$0xff] %vm175, %v133
    %179 = vst.msk [vmem:[#allocation2 + $0x8] sm:$0xff] %vm175, %v134
    // Predicated region
    $region30: #{tpu_custom_call.1} parent=1 // pred_check
      %p180 = pneg %p47
    $region31: #{tpu_custom_call.1} parent=1 // pred_check_branch
      %182 = sbr.rel (%p180) target = $region33
    $region32: #{tpu_custom_call.1} parent=1 // pred_region
      %v183 = vld [vmem:[%s3] sm:$0xff]
      %v184 = vld [vmem:[%s3 + $0x8] sm:$0xff]
      %v185 = vld [vmem:[#allocation2] sm:$0xff]
      %v186 = vld [vmem:[#allocation2 + $0x8] sm:$0xff]
      %v187 = vld [vmem:[#allocation3] sm:$0xff]
      %v188 = vld [vmem:[#allocation3 + $0x8] sm:$0xff]
      %v189 = vlog2.pop %v187
      %v190 = vmul.f32 %v189, 0.6931472
      %v191 = vlog2.pop %v188
      %v192 = vmul.f32 %v191, 0.6931472
      %v193 = vadd.f32 %v185, %v190
      %v194 = vadd.f32 %v186, %v192
      %v195 = vmul.f32 %v193, 0.05
      %v196 = vmul.f32 %v194, 0.05
      %v197 = vsub.f32 %v183, %v195
      %v198 = vsub.f32 %v184, %v196
      %199 = vst.msk [vmem:[%s4] sm:$0xff] %vm175, %v197
      %200 = vst.msk [vmem:[%s4 + $0x8] sm:$0xff] %vm175, %v198
    $region33: #{tpu_custom_call.1} parent=1 // pred_fallthru
      _
    // Predicated region
    $region34: #{tpu_custom_call.1} parent=1 // pred_check
      _
    $region35: #{tpu_custom_call.1} parent=1 // pred_check_branch
      %202 = sbr.rel (0) target = $region37
    $region36: #{tpu_custom_call.1} parent=1 // pred_region
      _
    $region37: #{tpu_custom_call.1} parent=1 // pred_fallthru
      _
    // Predicated region
    $region38: #{tpu_custom_call.1} parent=1 // pred_check
      _
    $region39: #{tpu_custom_call.1} parent=1 // pred_check_branch
      %204 = sbr.rel (0) target = $region41
    $region40: #{tpu_custom_call.1} parent=1 // pred_region
      _
    $region41: #{tpu_custom_call.1} parent=1 // pred_fallthru
      _
    %205 = vsyncpa [#allocation5], 1
    %206 = vsyncpa [#allocation7], 1

</llo_original>
